<compile_context>
chip_gen: v6e
topology: v6e:2x2x1
jax: 0.10.0
libtpu: 0.0.40
codegen_flags: <defaults>
</compile_context>

<pallas_src>
import functools
import math

import jax
import jax.numpy as jnp
from jax.experimental import pallas as pl
from jax.experimental.pallas import tpu as pltpu

_LOG2 = math.log(2.0)


def _ssp(x):
    # PhysNet "shifted softplus": log(0.5*exp(x) + 0.5) = softplus(x) - log(2).
    return jnp.logaddexp(x, 0.0) - _LOG2


def _round_up(v, m):
    return (v + m - 1) // m * m


@functools.lru_cache(maxsize=1)
def _vmem_ceiling_bytes():
    """Generation-aware usable-VMEM ceiling: <= 75% of physical capacity."""
    try:
        cap = int(pltpu.get_tpu_info().vmem_capacity_bytes)
    except Exception:
        cap = 64 * 1024 * 1024  # conservative fallback: v7x physical VMEM
    return (cap * 3) // 4        # ~48 MiB on v7x, ~96 MiB on v5e/v6e


def _invariant_spec(shape):
    """BlockSpec for a grid-invariant operand (constant index_map).

    Fetched exactly once, so request single buffering when the installed
    Pallas supports pipeline_mode (frees VMEM for bigger row tiles).
    """
    index_map = lambda i: (0,) * len(shape)
    buffered = getattr(pl, "Buffered", None)
    if buffered is not None:
        try:
            return pl.BlockSpec(shape, index_map, pipeline_mode=buffered(1))
        except TypeError:
            pass
    return pl.BlockSpec(shape, index_map)


def _residual_kernel(x_ref, w1_ref, b1_ref, w2_ref, b2_ref, o_ref):
    # x_ref : (TN, F)  input rows (also the residual source)
    # w1_ref: (F, F)   pre-transposed weight, layout [F_in, F_out]
    # b1_ref: (1, F)   f32 bias
    # w2_ref: (F, F)   pre-transposed weight
    # b2_ref: (1, F)   f32 bias
    # o_ref : (TN, F)
    w_dtype = w1_ref.dtype
    h = _ssp(x_ref[...].astype(jnp.float32))
    h = jnp.dot(h.astype(w_dtype), w1_ref[...],
                preferred_element_type=jnp.float32) + b1_ref[...]
    h = _ssp(h)
    h = jnp.dot(h.astype(w_dtype), w2_ref[...],
                preferred_element_type=jnp.float32) + b2_ref[...]
    # Residual add: re-read the still-resident x tile instead of keeping an
    # f32 copy live across both matmuls (uses spare vld slots, less spill).
    o_ref[...] = (h + x_ref[...].astype(jnp.float32)).astype(o_ref.dtype)


@functools.partial(jax.jit, static_argnames=("tile_n", "weight_dtype"))
def residual_layer(x, w1, b1, w2, b2, *, tile_n=None, weight_dtype=None):
    """PhysNet ResidualLayer forward.

    x : [N, F]; w1, w2 : [F_out, F_in] (torch nn.Linear layout); b1, b2 : [F].
    weight_dtype: optionally cast weights (e.g. jnp.bfloat16) for bf16-native
    MXU throughput on v5e; accumulation stays f32.
    """
    N, F = x.shape
    x_dtype = x.dtype

    if weight_dtype is not None:
        w1 = w1.astype(weight_dtype)
        w2 = w2.astype(weight_dtype)

    itm_x = jnp.dtype(x_dtype).itemsize
    itm_w = jnp.dtype(w1.dtype).itemsize

    # VMEM-layout footprint helpers (lane dim pads to 128, sublane to 8).
    F_lane = _round_up(F, 128)
    F_sub = _round_up(F, 8)
    # Resident weights + biases (worst case: double-buffered).
    w_bytes = 2 * 2 * F_sub * F_lane * itm_w + 2 * 2 * 8 * F_lane * 4
    # Per-row VMEM: double-buffered in/out tiles plus ~4 f32-wide temporaries.
    per_row = F_lane * (2 * 2 * itm_x + 4 * 4)

    ceiling = _vmem_ceiling_bytes()
    headroom = 4 << 20

    if tile_n is None:
        budget = max(ceiling - headroom - w_bytes, per_row * 8)
        max_rows = max(8, min(2048, (budget // per_row) // 8 * 8))
        # >= 2 grid steps so the "parallel" row axis shards across both v7x TCs.
        tile_n = max(8, min(max_rows, _round_up(pl.cdiv(N, 2), 8)))
    tile_n = max(8, _round_up(int(tile_n), 8))

    # Row padding only (feature dim stays at its real width F).  Padded rows
    # are zeros -> deterministic garbage outputs that are sliced off below.
    Np = _round_up(N, tile_n)
    x_p = x if Np == N else jnp.pad(x, ((0, Np - N), (0, 0)))

    # Pre-transpose weights once (hoists the XLU transpose out of the kernel).
    w1_t = jnp.transpose(w1)
    w2_t = jnp.transpose(w2)
    b1_p = b1.astype(jnp.float32).reshape(1, F)
    b2_p = b2.astype(jnp.float32).reshape(1, F)

    cost = pl.CostEstimate(
        flops=4 * N * F * F,            # two [N,F] x [F,F] matmuls
        transcendentals=4 * N * F,      # two ssp passes ~ (exp + log) each
        bytes_accessed=2 * N * F * itm_x + 2 * F * F * itm_w + 2 * F * 4,
    )

    vmem_est = (w_bytes
                + 2 * 2 * tile_n * F_lane * itm_x   # double-buffered x/out tiles
                + 4 * tile_n * F_lane * 4)          # f32 intermediates
    vmem_limit = int(min(ceiling, max(vmem_est + headroom, 16 << 20)))
    # TODO(synk): for very large F (>= ~2k f32 on v7x) the resident weights no
    # longer fit VMEM; that regime needs weight-K tiling, not just row tiling.

    out_p = pl.pallas_call(
        _residual_kernel,
        out_shape=jax.ShapeDtypeStruct((Np, F), x_dtype),
        grid_spec=pltpu.PrefetchScalarGridSpec(
            num_scalar_prefetch=0,
            grid=(Np // tile_n,),
            in_specs=[
                pl.BlockSpec((tile_n, F), lambda i: (i, 0)),   # x tile
                _invariant_spec((F, F)),                        # W1^T (resident)
                _invariant_spec((1, F)),                        # b1
                _invariant_spec((F, F)),                        # W2^T (resident)
                _invariant_spec((1, F)),                        # b2
            ],
            out_specs=pl.BlockSpec((tile_n, F), lambda i: (i, 0)),
        ),
        compiler_params=pltpu.CompilerParams(
            dimension_semantics=("parallel",),   # row tiles shard across TCs
            vmem_limit_bytes=vmem_limit,
        ),
        cost_estimate=cost,
    )(x_p, w1_t, b1_p, w2_t, b2_p)

    return out_p if Np == N else out_p[:N]


def _semi_orthogonal_glorot_weights(key, f_out, f_in):
    # Deterministic stand-in for PhysNet's semi_orthogonal_glorot_weights:
    # orthogonalize a random matrix and scale with the glorot factor.
    a = jax.random.normal(key, (f_out, f_in), dtype=jnp.float32)
    q, _ = jnp.linalg.qr(a)
    scale = jnp.sqrt(2.0 / (f_in + f_out))
    return (q * scale).astype(jnp.float32)


def _reference(x, w1, b1, w2, b2):
    h = _ssp(x) @ w1.T + b1
    h = _ssp(h) @ w2.T + b2
    return h + x


if __name__ == "__main__":
    F = 32          # feature width of the residual block
    key = jax.random.PRNGKey(0)
    kx1, kx2, kw1, kw2 = jax.random.split(key, 4)

    w1 = _semi_orthogonal_glorot_weights(kw1, F, F)
    b1 = jnp.zeros((F,), dtype=jnp.float32)        # lin1.bias.data.zero_()
    w2 = _semi_orthogonal_glorot_weights(kw2, F, F)
    b2 = jnp.zeros((F,), dtype=jnp.float32)        # lin2.bias.data.zero_()

    # Case 1: auto tile -> two grid steps of 8 rows (both v7x TCs get work).
    x1 = jax.random.normal(kx1, (16, F), dtype=jnp.float32)
    out1 = residual_layer(x1, w1, b1, w2, b2)
    jax.block_until_ready(out1)
    assert jnp.allclose(out1, _reference(x1, w1, b1, w2, b2), atol=1e-5, rtol=1e-5)

    # Case 2: N not divisible by the tile -> exercises row padding + 4-step grid.
    x2 = jax.random.normal(kx2, (50, F), dtype=jnp.float32)
    out2 = residual_layer(x2, w1, b1, w2, b2, tile_n=16)
    jax.block_until_ready(out2)
    assert jnp.allclose(out2, _reference(x2, w1, b1, w2, b2), atol=1e-5, rtol=1e-5)

    print("KERNEL_OK")
</pallas_src>

<mosaic_0001>
module attributes {stable_mosaic.version = 11 : i64} {
  func.func @_residual_kernel(%arg0: i32, %arg1: memref<8x32xf32, #tpu.memory_space<vmem>>, %arg2: memref<32x32xf32, #tpu.memory_space<vmem>>, %arg3: memref<1x32xf32, #tpu.memory_space<vmem>>, %arg4: memref<32x32xf32, #tpu.memory_space<vmem>>, %arg5: memref<1x32xf32, #tpu.memory_space<vmem>>, %arg6: memref<8x32xf32, #tpu.memory_space<vmem>>) attributes {dimension_semantics = [#tpu.dimension_semantics<parallel>], iteration_bounds = array<i64: 2>, scalar_prefetch = 0 : i64, scratch_operands = 0 : i64, tpu.core_type = #tpu.core_type<tc>, window_params = [{transform_indices = @transform_0, window_bounds = array<i64: 8, 32>}, {pipeline_mode = #tpu.pipeline_mode<synchronous>, transform_indices = @transform_1, window_bounds = array<i64: 32, 32>}, {pipeline_mode = #tpu.pipeline_mode<synchronous>, transform_indices = @transform_2, window_bounds = array<i64: 1, 32>}, {pipeline_mode = #tpu.pipeline_mode<synchronous>, transform_indices = @transform_3, window_bounds = array<i64: 32, 32>}, {pipeline_mode = #tpu.pipeline_mode<synchronous>, transform_indices = @transform_4, window_bounds = array<i64: 1, 32>}, {transform_indices = @transform_5, window_bounds = array<i64: 8, 32>}]} {
    %c0 = arith.constant 0 : index
    %c0_0 = arith.constant 0 : index
    %0 = vector.load %arg1[%c0, %c0_0] : memref<8x32xf32, #tpu.memory_space<vmem>>, vector<8x32xf32>
    %cst = arith.constant 0.000000e+00 : f32
    %1 = vector.broadcast %cst : f32 to vector<8x32xf32>
    %2 = arith.maximumf %0, %1 : vector<8x32xf32>
    %3 = vector.broadcast %cst : f32 to vector<8x32xf32>
    %4 = arith.subf %0, %3 : vector<8x32xf32>
    %5 = arith.cmpf one, %4, %4 : vector<8x32xf32>
    %6 = vector.broadcast %cst : f32 to vector<8x32xf32>
    %7 = arith.addf %0, %6 : vector<8x32xf32>
    %8 = math.absf %4 : vector<8x32xf32>
    %cst_1 = arith.constant 0.000000e+00 : f32
    %9 = vector.broadcast %cst_1 : f32 to vector<8x32xf32>
    %10 = arith.subf %9, %8 : vector<8x32xf32>
    %11 = math.exp %10 : vector<8x32xf32>
    %12 = math.log1p %11 : vector<8x32xf32>
    %13 = arith.addf %2, %12 : vector<8x32xf32>
    %14 = arith.select %5, %7, %13 : vector<8x32xi1>, vector<8x32xf32>
    %cst_2 = arith.constant 0.693147182 : f32
    %15 = vector.broadcast %cst_2 : f32 to vector<8x32xf32>
    %16 = arith.subf %14, %15 : vector<8x32xf32>
    %c0_3 = arith.constant 0 : index
    %c0_4 = arith.constant 0 : index
    %17 = vector.load %arg2[%c0_3, %c0_4] : memref<32x32xf32, #tpu.memory_space<vmem>>, vector<32x32xf32>
    %cst_5 = arith.constant dense<0.000000e+00> : vector<8x32xf32>
    %18 = tpu.matmul %16, %17, %cst_5 {dimension_numbers = #tpu.dot_dimension_numbers<[1], [0], [0], [1], [0, 0, 1, 1], [], []>} : vector<8x32xf32>, vector<32x32xf32>, vector<8x32xf32> -> vector<8x32xf32>
    %c0_6 = arith.constant 0 : index
    %c0_7 = arith.constant 0 : index
    %19 = vector.load %arg3[%c0_6, %c0_7] : memref<1x32xf32, #tpu.memory_space<vmem>>, vector<1x32xf32>
    %20 = vector.broadcast %19 : vector<1x32xf32> to vector<8x32xf32>
    %21 = arith.addf %18, %20 : vector<8x32xf32>
    %cst_8 = arith.constant 0.000000e+00 : f32
    %22 = vector.broadcast %cst_8 : f32 to vector<8x32xf32>
    %23 = arith.maximumf %21, %22 : vector<8x32xf32>
    %24 = vector.broadcast %cst_8 : f32 to vector<8x32xf32>
    %25 = arith.subf %21, %24 : vector<8x32xf32>
    %26 = arith.cmpf one, %25, %25 : vector<8x32xf32>
    %27 = vector.broadcast %cst_8 : f32 to vector<8x32xf32>
    %28 = arith.addf %21, %27 : vector<8x32xf32>
    %29 = math.absf %25 : vector<8x32xf32>
    %cst_9 = arith.constant 0.000000e+00 : f32
    %30 = vector.broadcast %cst_9 : f32 to vector<8x32xf32>
    %31 = arith.subf %30, %29 : vector<8x32xf32>
    %32 = math.exp %31 : vector<8x32xf32>
    %33 = math.log1p %32 : vector<8x32xf32>
    %34 = arith.addf %23, %33 : vector<8x32xf32>
    %35 = arith.select %26, %28, %34 : vector<8x32xi1>, vector<8x32xf32>
    %cst_10 = arith.constant 0.693147182 : f32
    %36 = vector.broadcast %cst_10 : f32 to vector<8x32xf32>
    %37 = arith.subf %35, %36 : vector<8x32xf32>
    %c0_11 = arith.constant 0 : index
    %c0_12 = arith.constant 0 : index
    %38 = vector.load %arg4[%c0_11, %c0_12] : memref<32x32xf32, #tpu.memory_space<vmem>>, vector<32x32xf32>
    %cst_13 = arith.constant dense<0.000000e+00> : vector<8x32xf32>
    %39 = tpu.matmul %37, %38, %cst_13 {dimension_numbers = #tpu.dot_dimension_numbers<[1], [0], [0], [1], [0, 0, 1, 1], [], []>} : vector<8x32xf32>, vector<32x32xf32>, vector<8x32xf32> -> vector<8x32xf32>
    %c0_14 = arith.constant 0 : index
    %c0_15 = arith.constant 0 : index
    %40 = vector.load %arg5[%c0_14, %c0_15] : memref<1x32xf32, #tpu.memory_space<vmem>>, vector<1x32xf32>
    %41 = vector.broadcast %40 : vector<1x32xf32> to vector<8x32xf32>
    %42 = arith.addf %39, %41 : vector<8x32xf32>
    %c0_16 = arith.constant 0 : index
    %c0_17 = arith.constant 0 : index
    %43 = vector.load %arg1[%c0_16, %c0_17] : memref<8x32xf32, #tpu.memory_space<vmem>>, vector<8x32xf32>
    %44 = arith.addf %42, %43 : vector<8x32xf32>
    %c0_18 = arith.constant 0 : index
    %c0_19 = arith.constant 0 : index
    %45 = vector.load %arg6[%c0_18, %c0_19] : memref<8x32xf32, #tpu.memory_space<vmem>>, vector<8x32xf32>
    tpu.vector_store %arg6[%c0_18, %c0_19], %44 {strides = array<i32>} : memref<8x32xf32, #tpu.memory_space<vmem>>, vector<8x32xf32>,
    return
  }
  func.func @transform_0(%arg0: i32) -> (i32, i32) {
    %c0_i32 = arith.constant 0 : i32
    %c0_i32_0 = arith.constant 0 : i32
    return %arg0, %c0_i32 : i32, i32
  }
  func.func @transform_1(%arg0: i32) -> (i32, i32) {
    %c0_i32 = arith.constant 0 : i32
    %c0_i32_0 = arith.constant 0 : i32
    %c0_i32_1 = arith.constant 0 : i32
    return %c0_i32, %c0_i32_0 : i32, i32
  }
  func.func @transform_2(%arg0: i32) -> (i32, i32) {
    %c0_i32 = arith.constant 0 : i32
    %c0_i32_0 = arith.constant 0 : i32
    %c0_i32_1 = arith.constant 0 : i32
    return %c0_i32, %c0_i32_0 : i32, i32
  }
  func.func @transform_3(%arg0: i32) -> (i32, i32) {
    %c0_i32 = arith.constant 0 : i32
    %c0_i32_0 = arith.constant 0 : i32
    %c0_i32_1 = arith.constant 0 : i32
    return %c0_i32, %c0_i32_0 : i32, i32
  }
  func.func @transform_4(%arg0: i32) -> (i32, i32) {
    %c0_i32 = arith.constant 0 : i32
    %c0_i32_0 = arith.constant 0 : i32
    %c0_i32_1 = arith.constant 0 : i32
    return %c0_i32, %c0_i32_0 : i32, i32
  }
  func.func @transform_5(%arg0: i32) -> (i32, i32) {
    %c0_i32 = arith.constant 0 : i32
    %c0_i32_0 = arith.constant 0 : i32
    return %arg0, %c0_i32 : i32, i32
  }
}

</mosaic_0001>

<llo_original>
// kernel: residual_layer.1
$region0: #{residual_layer.1}
  #allocation0 [shape = 'u32[]', space=smem, size = 0x4, offset = 0x4, fixed_abs, tag = 'smem constant byte address 0x4 - core index']
  #allocation1 [shape = 'u32[144,128]{1,0:T(1,128)}', space=vmem, size = 0x12000, scoped, tag = 'internal scratch']
  %s0 = inlined_call_operand.vmem [shape: f32[16,32], index: 0, kind: input, shape index: {}]
  %s1 = inlined_call_operand.vmem [shape: f32[32,32], index: 1, kind: input, shape index: {}]
  %s2 = inlined_call_operand.vmem [shape: f32[1,32], index: 2, kind: input, shape index: {}]
  %s3 = inlined_call_operand.vmem [shape: f32[32,32], index: 3, kind: input, shape index: {}]
  %s4 = inlined_call_operand.vmem [shape: f32[1,32], index: 4, kind: input, shape index: {}]
  %s5 = inlined_call_operand.hbm [shape: f32[16,32], index: 5, kind: output, shape index: {}]
  %s6 = sld [smem:[#allocation0]]
  $region53: #{residual_layer.1} parent=0
    _
  %s8 = ssub.s32 1, %s6
  %s9 = scalar_select 0, %s8, %s6
  $region1: #{residual_layer.1} parent=0
    #allocation2 [shape = 'u8[8192]{0}', space=vmem, size = 0x2000, scoped, tag = 'output window, operand 0']
    #allocation3 [shape = 's32[2]{0}', space=sflag, size = 0x8, scoped, tag = 'scoped memory for residual_layer.1']
    %10 = vsyncpa [#allocation3], 0
    %s11 = scalar_lea.sflag [#allocation3], 1
    %12 = vsyncpa %s11, 0
    loop: start=0, step=1, limit=4
    $region2: #{residual_layer.1} parent=1 // loop_pre_header
      _
    $region3: #{residual_layer.1} parent=1 // loop_header
      %s14 = sphi 0, %s18
      %p15 = scmp.ge.s32.totalorder %s14, 4
      %s24 = sphi 0, %s26
      %s27 = sphi 0, %s24
      %s28 = sphi 0, %s27
      %s44 = sphi 0, %s28
      %s48 = sphi 0, %s48
      %s50 = sphi 0, %s48
      %s51 = sphi 0, %s50
      %s65 = sphi 0, %s51
      %s69 = sphi 0, %s69
      %s71 = sphi 0, %s69
      %s72 = sphi 0, %s71
      %s86 = sphi 0, %s72
      %s90 = sphi 0, %s90
      %s92 = sphi 0, %s90
      %s93 = sphi 0, %s92
      %s107 = sphi 0, %s93
      %s111 = sphi 0, %s111
      %s113 = sphi 0, %s111
      %s114 = sphi 0, %s113
      %s128 = sphi 0, %s114
      %s134 = sphi 0, %s136
      %s137 = sphi 0, %s134
      %s138 = sphi 0, %s137
      %s154 = sphi 0, %s138
    $region4: #{residual_layer.1} parent=1 // loop_header_branch
      %17 = sbr.rel (%p15) target = $region8
    $region5: #{residual_layer.1} parent=1 // loop_body
      %s19 = ssub.s32 %s14, 1
      %s20 = ssub.s32 %s14, 2
      %s21 = sadd.s32 %s14, 1
      %s22 = ssub.s32 %s14, %s21
      %p23 = scmp.eq.s32.totalorder %s22, 0
      %s25 = sadd.s32 %s24, 1
      %s26 = scalar_select %p23, %s24, %s25
      %p29 = pneg %p23
      %p30 = scmp.eq.s32.totalorder %s14, 1
      %p31 = por %p29, %p30
      %p32 = scmp.ne.s32.totalorder %s24, %s27
      %p33 = scmp.eq.s32.totalorder %s14, 0
      %p34 = por %p32, %p33
      %p35 = scmp.ne.s32.totalorder %s24, %s27
      %p36 = scmp.eq.s32.totalorder %s19, 1
      %p37 = por %p35, %p36
      %p38 = scmp.ne.s32.totalorder %s27, %s28
      %p39 = scmp.eq.s32.totalorder %s19, 0
      %p40 = por %p38, %p39
      %p41 = scmp.ne.s32.totalorder %s27, %s28
      %p42 = scmp.eq.s32.totalorder %s20, 1
      %p43 = por %p41, %p42
      %p45 = scmp.ne.s32.totalorder %s28, %s44
      %p46 = scmp.eq.s32.totalorder %s20, 0
      %p47 = por %p45, %p46
      %s49 = sadd.s32 %s48, 1
      %p52 = scmp.eq.s32.totalorder %s14, 1
      %p53 = scmp.ne.s32.totalorder %s48, %s50
      %p54 = scmp.eq.s32.totalorder %s14, 0
      %p55 = por %p53, %p54
      %p56 = scmp.ne.s32.totalorder %s48, %s50
      %p57 = scmp.eq.s32.totalorder %s19, 1
      %p58 = por %p56, %p57
      %p59 = scmp.ne.s32.totalorder %s50, %s51
      %p60 = scmp.eq.s32.totalorder %s19, 0
      %p61 = por %p59, %p60
      %p62 = scmp.ne.s32.totalorder %s50, %s51
      %p63 = scmp.eq.s32.totalorder %s20, 1
      %p64 = por %p62, %p63
      %p66 = scmp.ne.s32.totalorder %s51, %s65
      %p67 = scmp.eq.s32.totalorder %s20, 0
      %p68 = por %p66, %p67
      %s70 = sadd.s32 %s69, 1
      %p73 = scmp.eq.s32.totalorder %s14, 1
      %p74 = scmp.ne.s32.totalorder %s69, %s71
      %p75 = scmp.eq.s32.totalorder %s14, 0
      %p76 = por %p74, %p75
      %p77 = scmp.ne.s32.totalorder %s69, %s71
      %p78 = scmp.eq.s32.totalorder %s19, 1
      %p79 = por %p77, %p78
      %p80 = scmp.ne.s32.totalorder %s71, %s72
      %p81 = scmp.eq.s32.totalorder %s19, 0
      %p82 = por %p80, %p81
      %p83 = scmp.ne.s32.totalorder %s71, %s72
      %p84 = scmp.eq.s32.totalorder %s20, 1
      %p85 = por %p83, %p84
      %p87 = scmp.ne.s32.totalorder %s72, %s86
      %p88 = scmp.eq.s32.totalorder %s20, 0
      %p89 = por %p87, %p88
      %s91 = sadd.s32 %s90, 1
      %p94 = scmp.eq.s32.totalorder %s14, 1
      %p95 = scmp.ne.s32.totalorder %s90, %s92
      %p96 = scmp.eq.s32.totalorder %s14, 0
      %p97 = por %p95, %p96
      %p98 = scmp.ne.s32.totalorder %s90, %s92
      %p99 = scmp.eq.s32.totalorder %s19, 1
      %p100 = por %p98, %p99
      %p101 = scmp.ne.s32.totalorder %s92, %s93
      %p102 = scmp.eq.s32.totalorder %s19, 0
      %p103 = por %p101, %p102
      %p104 = scmp.ne.s32.totalorder %s92, %s93
      %p105 = scmp.eq.s32.totalorder %s20, 1
      %p106 = por %p104, %p105
      %p108 = scmp.ne.s32.totalorder %s93, %s107
      %p109 = scmp.eq.s32.totalorder %s20, 0
      %p110 = por %p108, %p109
      %s112 = sadd.s32 %s111, 1
      %p115 = scmp.eq.s32.totalorder %s14, 1
      %p116 = scmp.ne.s32.totalorder %s111, %s113
      %p117 = scmp.eq.s32.totalorder %s14, 0
      %p118 = por %p116, %p117
      %p119 = scmp.ne.s32.totalorder %s111, %s113
      %p120 = scmp.eq.s32.totalorder %s19, 1
      %p121 = por %p119, %p120
      %p122 = scmp.ne.s32.totalorder %s113, %s114
      %p123 = scmp.eq.s32.totalorder %s19, 0
      %p124 = por %p122, %p123
      %p125 = scmp.ne.s32.totalorder %s113, %s114
      %p126 = scmp.eq.s32.totalorder %s20, 1
      %p127 = por %p125, %p126
      %p129 = scmp.ne.s32.totalorder %s114, %s128
      %p130 = scmp.eq.s32.totalorder %s20, 0
      %p131 = por %p129, %p130
      %s132 = ssub.s32 %s14, %s21
      %p133 = scmp.eq.s32.totalorder %s132, 0
      %s135 = sadd.s32 %s134, 1
      %s136 = scalar_select %p133, %s134, %s135
      %p139 = pneg %p133
      %p140 = scmp.eq.s32.totalorder %s14, 1
      %p141 = por %p139, %p140
      %p142 = scmp.ne.s32.totalorder %s134, %s137
      %p143 = scmp.eq.s32.totalorder %s14, 0
      %p144 = por %p142, %p143
      %p145 = scmp.ne.s32.totalorder %s134, %s137
      %p146 = scmp.eq.s32.totalorder %s19, 1
      %p147 = por %p145, %p146
      %p148 = scmp.ne.s32.totalorder %s137, %s138
      %p149 = scmp.eq.s32.totalorder %s19, 0
      %p150 = por %p148, %p149
      %p151 = scmp.ne.s32.totalorder %s137, %s138
      %p152 = scmp.eq.s32.totalorder %s20, 1
      %p153 = por %p151, %p152
      %p155 = scmp.ne.s32.totalorder %s138, %s154
      %p156 = scmp.eq.s32.totalorder %s20, 0
      %p157 = por %p155, %p156
      %p158 = scmp.le.s32.totalorder 1, %s14
      %p159 = scmp.lt.s32.totalorder %s14, 3
      %p160 = pnand %p158, %p159
      %p161 = pneg %p160
      // Predicated region
      $region9: #{residual_layer.1} parent=5 // pred_check
        _
      $region10: #{residual_layer.1} parent=5 // pred_check_branch
        %163 = sbr.rel (%p160) target = $region12
      $region11: #{residual_layer.1} parent=5 // pred_region
        %s164 = ssub.s32 %s14, 1
        // Predicated region
        $region13: #{residual_layer.1} parent=11 // pred_check
          %p165 = pneg %p61
        $region14: #{residual_layer.1} parent=11 // pred_check_branch
          %167 = sbr.rel (%p165) target = $region16
        $region15: #{residual_layer.1} parent=11 // pred_region
          _
        $region16: #{residual_layer.1} parent=11 // pred_fallthru
          _
        // Predicated region
        $region17: #{residual_layer.1} parent=11 // pred_check
          %p168 = pneg %p82
        $region18: #{residual_layer.1} parent=11 // pred_check_branch
          %170 = sbr.rel (%p168) target = $region20
        $region19: #{residual_layer.1} parent=11 // pred_region
          _
        $region20: #{residual_layer.1} parent=11 // pred_fallthru
          _
        // Predicated region
        $region21: #{residual_layer.1} parent=11 // pred_check
          %p171 = pneg %p103
        $region22: #{residual_layer.1} parent=11 // pred_check_branch
          %173 = sbr.rel (%p171) target = $region24
        $region23: #{residual_layer.1} parent=11 // pred_region
          _
        $region24: #{residual_layer.1} parent=11 // pred_fallthru
          _
        // Predicated region
        $region25: #{residual_layer.1} parent=11 // pred_check
          %p174 = pneg %p124
        $region26: #{residual_layer.1} parent=11 // pred_check_branch
          %176 = sbr.rel (%p174) target = $region28
        $region27: #{residual_layer.1} parent=11 // pred_region
          _
        $region28: #{residual_layer.1} parent=11 // pred_fallthru
          _
      $region12: #{residual_layer.1} parent=5 // pred_fallthru
        _
      %p177 = scmp.lt.s32.totalorder %s14, 2
      // Predicated region
      $region29: #{residual_layer.1} parent=5 // pred_check
        %p178 = pneg %p177
      $region30: #{residual_layer.1} parent=5 // pred_check_branch
        %180 = sbr.rel (%p178) target = $region32
      $region31: #{residual_layer.1} parent=5 // pred_region
        // Predicated region
        $region33: #{residual_layer.1} parent=31 // pred_check
          %p181 = pneg %p34
        $region34: #{residual_layer.1} parent=31 // pred_check_branch
          %183 = sbr.rel (%p181) target = $region36
        $region35: #{residual_layer.1} parent=31 // pred_region
          %p184 = scmp.lt.s32.totalorder %s14, 1
          %s185 = scalar_select %p184, %s14, 1
          %s186 = smul.addr %s185, 8
          %s187 = scalar_lea.vmem %s0, %s186
        $region36: #{residual_layer.1} parent=31 // pred_fallthru
          _
      $region32: #{residual_layer.1} parent=5 // pred_fallthru
        _
      %p188 = scmp.le.s32.totalorder 1, %s14
      %p189 = scmp.lt.s32.totalorder %s14, 3
      %p190 = pnand %p188, %p189
      %p191 = pneg %p190
      // Predicated region
      $region37: #{residual_layer.1} parent=5 // pred_check
        _
      $region38: #{residual_layer.1} parent=5 // pred_check_branch
        %193 = sbr.rel (%p190) target = $region40
      $region39: #{residual_layer.1} parent=5 // pred_region
        %s194 = ssub.s32 %s14, 1
        %p195 = scmp.lt.s32.totalorder %s19, 1
        %s196 = scalar_select %p195, %s19, 1
        %s197 = smul.addr %s196, 8
        %s198 = scalar_lea.vmem %s0, %s197
        %p199 = pneg %p40
        %p200 = pneg %p37
        %p201 = pneg %p61
        %p202 = pneg %p58
        %p203 = pneg %p82
        %p204 = pneg %p79
        %p205 = pneg %p103
        %p206 = pneg %p100
        %p207 = pneg %p124
        %p208 = pneg %p121
        %p209 = pneg %p150
        %p210 = pneg %p147
        %s211 = sand.u32 %s137, 1
        %s212 = scalar_lea.sflag [#allocation3], %s211
        %s213 = sand.u32 %s137, 1
        %s214 = smul.addr %s213, 8
        %s215 = scalar_lea.vmem [#allocation2], %s214
        %p216 = scmp.lt.s32.totalorder %s19, 1
        %s217 = scalar_select %p216, %s19, 1
        %s218 = smul.addr %s217, 8
        %s219 = scalar_lea.vmem %s0, %s218
        %v220 = vld [vmem:[%s219] sm:$0xff]
        %v221 = vmax.f32 %v220, 0.0
        %vm222 = vcmp.ne.f32.partialorder %v220, %v220
        %v223 = vadd.f32 %v220, 0.0
        %v224 = vand.u32 2147483647, %v220
        %v225 = vsub.f32 0.0, %v224
        %v226 = vmul.f32 %v225, 1.442695
        %v227 = vpow.pop %v226
        %v228 = vadd.f32 %v227, 1.0
        %v229 = vlog2.pop %v228
        %v230 = vmul.f32 %v229, 0.6931472
        %v231 = vmul.f32 -0.5, %v227
        %v232 = vadd.f32 %v231, 1.0
        %v233 = vmul.f32 %v232, %v227
        %v234 = vand.u32 2147483647, %v227
        %vm235 = vcmp.lt.f32.partialorder %v234, 0.0004427343
        %v236 = vsel %vm235, %v233, %v230
        %v237 = vadd.f32 %v221, %v236
        %v238 = vsel %vm222, %v223, %v237
        %v239 = vsub.f32 %v238, 0.6931472
        %v240 = vld [vmem:[%s1] sm:$0xff]
        %v241 = vld [vmem:[%s1 + $0x8] sm:$0xff]
        %v242 = vld [vmem:[%s1 + $0x10] sm:$0xff]
        %v243 = vld [vmem:[%s1 + $0x18] sm:$0xff]
        %v244 = vld [vmem:[%s2] sm:$0x1]
        %v246 = vlaneseq
        %v247 = vshrl.u32 %v246, 7
        %v248 = vsub.s32 0, %v247
        %v249 = vrot.slane %v244, %v248
        %vm251 = vcmask 261120
        %v253 = vsel %vm251, %v239, 0
        %255 = vmatprep.subr.mxu0 0.0
        %256 = vmatpush1.msra.mxu0 0.0
        %257 = vmatprep.subr.mxu0 0.0
        %258 = vmatpush1.msra.mxu0 0.0
        %259 = vmatprep.subr.mxu0 0.0
        %260 = vmatpush1.msra.mxu0 0.0
        %261 = vmatprep.subr.mxu0 0.0
        %262 = vmatpush1.msra.mxu0 0.0
        %263 = vmatprep.subr.mxu0 0.0
        %264 = vmatpush1.msra.mxu0 0.0
        %265 = vmatprep.subr.mxu0 0.0
        %266 = vmatpush1.msra.mxu0 0.0
        %267 = vmatprep.subr.mxu0 0.0
        %268 = vmatpush1.msra.mxu0 0.0
        %269 = vmatprep.subr.mxu0 0.0
        %270 = vmatpush1.msra.mxu0 0.0
        %271 = vmatprep.subr.mxu0 0.0
        %272 = vmatpush1.msra.mxu0 0.0
        %273 = vmatprep.subr.mxu0 0.0
        %274 = vmatpush1.msra.mxu0 0.0
        %275 = vmatprep.subr.mxu0 0.0
        %276 = vmatpush1.msra.mxu0 0.0
        %277 = vmatprep.subr.mxu0 0.0
        %278 = vmatpush1.msra.mxu0 0.0
        %279 = vmatprep.subr.mxu0 0.0
        %280 = vmatpush1.msra.mxu0 %v243
        %281 = vmatprep.subr.mxu0 0.0
        %282 = vmatpush1.msra.mxu0 %v242
        %283 = vmatprep.subr.mxu0 0.0
        %284 = vmatpush1.msra.mxu0 %v241
        %285 = vmatprep.subr.mxu0 0.0
        %286 = vmatpush1.msra.mxu0 %v240
        %287 = vmatprep.subr.mxu0 0.0
        %288 = vmatpush2.msra.mxu0 0.0
        %289 = vmatprep.subr.mxu0 0.0
        %290 = vmatpush2.msra.mxu0 0.0
        %291 = vmatprep.subr.mxu0 0.0
        %292 = vmatpush2.msra.mxu0 0.0
        %293 = vmatprep.subr.mxu0 0.0
        %294 = vmatpush2.msra.mxu0 0.0
        %295 = vmatprep.subr.mxu0 0.0
        %296 = vmatpush2.msra.mxu0 0.0
        %297 = vmatprep.subr.mxu0 0.0
        %298 = vmatpush2.msra.mxu0 0.0
        %299 = vmatprep.subr.mxu0 0.0
        %300 = vmatpush2.msra.mxu0 0.0
        %301 = vmatprep.subr.mxu0 0.0
        %302 = vmatpush2.msra.mxu0 0.0
        %303 = vmatprep.subr.mxu0 0.0
        %304 = vmatpush2.msra.mxu0 0.0
        %305 = vmatprep.subr.mxu0 0.0
        %306 = vmatpush2.msra.mxu0 0.0
        %307 = vmatprep.subr.mxu0 0.0
        %308 = vmatpush2.msra.mxu0 0.0
        %309 = vmatprep.subr.mxu0 0.0
        %310 = vmatpush2.msra.mxu0 0.0
        %311 = vmatprep.subr.mxu0 0.0
        %312 = vmatpush2.msra.mxu0 0.0
        %313 = vmatprep.subr.mxu0 0.0
        %314 = vmatpush2.msra.mxu0 0.0
        %315 = vmatprep.subr.mxu0 0.0
        %316 = vmatpush2.msra.mxu0 0.0
        %317 = vmatprep.subr.mxu0 0.0
        %318 = vmatpush2.msra.mxu0 0.0
        %319 = vmatprep.mubr.f32.mxu0 0.0
        %320 = vmatmul.mubr.f32.gmra.mxu0 %v253
        %v321 = vpop.f32.mrf.mxu0
        %v322 = vadd.f32 %v249, %v321
        %v323 = vpop.f32.mrf.mxu0
        %324 = vdwg.mxu0
        %v325 = vmax.f32 %v322, 0.0
        %vm326 = vcmp.ne.f32.partialorder %v322, %v322
        %v327 = vadd.f32 %v322, 0.0
        %v328 = vand.u32 2147483647, %v322
        %v329 = vsub.f32 0.0, %v328
        %v330 = vmul.f32 %v329, 1.442695
        %v331 = vpow.pop %v330
        %v332 = vadd.f32 %v331, 1.0
        %v333 = vlog2.pop %v332
        %v334 = vmul.f32 %v333, 0.6931472
        %v335 = vmul.f32 -0.5, %v331
        %v336 = vadd.f32 %v335, 1.0
        %v337 = vmul.f32 %v336, %v331
        %v338 = vand.u32 2147483647, %v331
        %vm339 = vcmp.lt.f32.partialorder %v338, 0.0004427343
        %v340 = vsel %vm339, %v337, %v334
        %v341 = vadd.f32 %v325, %v340
        %v342 = vsel %vm326, %v327, %v341
        %v343 = vsub.f32 %v342, 0.6931472
        %v344 = vld [vmem:[%s3] sm:$0xff]
        %v345 = vld [vmem:[%s3 + $0x8] sm:$0xff]
        %v346 = vld [vmem:[%s3 + $0x10] sm:$0xff]
        %v347 = vld [vmem:[%s3 + $0x18] sm:$0xff]
        %v348 = vld [vmem:[%s4] sm:$0x1]
        %v350 = vlaneseq
        %v351 = vshrl.u32 %v350, 7
        %v352 = vsub.s32 0, %v351
        %v353 = vrot.slane %v348, %v352
        %v356 = vsel %vm251, %v343, 0
        %358 = vmatprep.subr.mxu0 0.0
        %359 = vmatpush1.msra.mxu0 0.0
        %360 = vmatprep.subr.mxu0 0.0
        %361 = vmatpush1.msra.mxu0 0.0
        %362 = vmatprep.subr.mxu0 0.0
        %363 = vmatpush1.msra.mxu0 0.0
        %364 = vmatprep.subr.mxu0 0.0
        %365 = vmatpush1.msra.mxu0 0.0
        %366 = vmatprep.subr.mxu0 0.0
        %367 = vmatpush1.msra.mxu0 0.0
        %368 = vmatprep.subr.mxu0 0.0
        %369 = vmatpush1.msra.mxu0 0.0
        %370 = vmatprep.subr.mxu0 0.0
        %371 = vmatpush1.msra.mxu0 0.0
        %372 = vmatprep.subr.mxu0 0.0
        %373 = vmatpush1.msra.mxu0 0.0
        %374 = vmatprep.subr.mxu0 0.0
        %375 = vmatpush1.msra.mxu0 0.0
        %376 = vmatprep.subr.mxu0 0.0
        %377 = vmatpush1.msra.mxu0 0.0
        %378 = vmatprep.subr.mxu0 0.0
        %379 = vmatpush1.msra.mxu0 0.0
        %380 = vmatprep.subr.mxu0 0.0
        %381 = vmatpush1.msra.mxu0 0.0
        %382 = vmatprep.subr.mxu0 0.0
        %383 = vmatpush1.msra.mxu0 %v347
        %384 = vmatprep.subr.mxu0 0.0
        %385 = vmatpush1.msra.mxu0 %v346
        %386 = vmatprep.subr.mxu0 0.0
        %387 = vmatpush1.msra.mxu0 %v345
        %388 = vmatprep.subr.mxu0 0.0
        %389 = vmatpush1.msra.mxu0 %v344
        %390 = vmatprep.subr.mxu0 0.0
        %391 = vmatpush2.msra.mxu0 0.0
        %392 = vmatprep.subr.mxu0 0.0
        %393 = vmatpush2.msra.mxu0 0.0
        %394 = vmatprep.subr.mxu0 0.0
        %395 = vmatpush2.msra.mxu0 0.0
        %396 = vmatprep.subr.mxu0 0.0
        %397 = vmatpush2.msra.mxu0 0.0
        %398 = vmatprep.subr.mxu0 0.0
        %399 = vmatpush2.msra.mxu0 0.0
        %400 = vmatprep.subr.mxu0 0.0
        %401 = vmatpush2.msra.mxu0 0.0
        %402 = vmatprep.subr.mxu0 0.0
        %403 = vmatpush2.msra.mxu0 0.0
        %404 = vmatprep.subr.mxu0 0.0
        %405 = vmatpush2.msra.mxu0 0.0
        %406 = vmatprep.subr.mxu0 0.0
        %407 = vmatpush2.msra.mxu0 0.0
        %408 = vmatprep.subr.mxu0 0.0
        %409 = vmatpush2.msra.mxu0 0.0
        %410 = vmatprep.subr.mxu0 0.0
        %411 = vmatpush2.msra.mxu0 0.0
        %412 = vmatprep.subr.mxu0 0.0
        %413 = vmatpush2.msra.mxu0 0.0
        %414 = vmatprep.subr.mxu0 0.0
        %415 = vmatpush2.msra.mxu0 0.0
        %416 = vmatprep.subr.mxu0 0.0
        %417 = vmatpush2.msra.mxu0 0.0
        %418 = vmatprep.subr.mxu0 0.0
        %419 = vmatpush2.msra.mxu0 0.0
        %420 = vmatprep.subr.mxu0 0.0
        %421 = vmatpush2.msra.mxu0 0.0
        %422 = vmatprep.mubr.f32.mxu0 0.0
        %423 = vmatmul.mubr.f32.gmra.mxu0 %v356
        %v424 = vpop.f32.mrf.mxu0
        %v425 = vadd.f32 %v353, %v424
        %v426 = vpop.f32.mrf.mxu0
        %427 = vdwg.mxu0
        %v428 = vadd.f32 %v425, %v220
        %429 = vst.msk [vmem:[%s215] sm:$0xff] %vm251, %v428
        %s430 = sand.u32 %s137, 1
        %s431 = scalar_lea.sflag [#allocation3], %s430
        %s432 = sand.u32 %s137, 1
        %s433 = smul.addr %s432, 8
        %s434 = scalar_lea.vmem [#allocation2], %s433
        // Predicated region
        $region41: #{residual_layer.1} parent=39 // pred_check
          %p435 = pneg %p147
        $region42: #{residual_layer.1} parent=39 // pred_check_branch
          %437 = sbr.rel (%p435) target = $region44
        $region43: #{residual_layer.1} parent=39 // pred_region
          %s439 = ssub.s32 128, 128
          %440 = vsyncadd %s431, %s439
          %s441 = smul.addr %s19, 128
          %s442 = scalar_lea.hbm %s5, %s441
          %s444 = sshll.u32 %s434, 4
          %s445 = int_to_ptr.vmem [resolvable:$true] %s444
          %447 = dma.vmem_to_hbm [thread:$0]  %s445, 128, %s442, %s431
        $region44: #{residual_layer.1} parent=39 // pred_fallthru
          _
      $region40: #{residual_layer.1} parent=5 // pred_fallthru
        _
      %p448 = scmp.le.s32.totalorder 2, %s14
      // Predicated region
      $region45: #{residual_layer.1} parent=5 // pred_check
        %p449 = pneg %p448
      $region46: #{residual_layer.1} parent=5 // pred_check_branch
        %451 = sbr.rel (%p449) target = $region48
      $region47: #{residual_layer.1} parent=5 // pred_region
        %s452 = ssub.s32 %s14, 2
        // Predicated region
        $region49: #{residual_layer.1} parent=47 // pred_check
          %p453 = pneg %p153
        $region50: #{residual_layer.1} parent=47 // pred_check_branch
          %455 = sbr.rel (%p453) target = $region52
        $region51: #{residual_layer.1} parent=47 // pred_region
          %s456 = sand.u32 %s138, 1
          %s457 = scalar_lea.sflag [#allocation3], %s456
          %s458 = sand.u32 %s138, 1
          %s459 = smul.addr %s458, 8
          %s460 = scalar_lea.vmem [#allocation2], %s459
          %461 = dma.done %s457, 128
        $region52: #{residual_layer.1} parent=47 // pred_fallthru
          _
      $region48: #{residual_layer.1} parent=5 // pred_fallthru
        _
    $region6: #{residual_layer.1} parent=1 // loop_footer
      %s18 = sadd.s32 1, %s14
    $region7: #{residual_layer.1} parent=1 // loop_footer_branch
      %13 = sbr.rel target = $region3
    $region8: #{residual_layer.1} parent=1 // loop_exit
      _
    %462 = vsyncpa [#allocation3], 1
    %s463 = scalar_lea.sflag [#allocation3], 1
    %464 = vsyncpa %s463, 1

</llo_original>
